<compile_context>
chip_gen: v6e
topology: v6e:2x2x1
jax: 0.10.0
libtpu: 0.0.40
codegen_flags: <defaults>
</compile_context>

<pallas_src>
import functools

import jax
import jax.numpy as jnp
from jax.experimental import pallas as pl
from jax.experimental.pallas import tpu as pltpu

_EPS = 1e-12  # torch.nn.functional.normalize default eps


def _ntxent_kernel(temp_ref, img_ref, txt_ref,           # inputs
                   logits_ref, col_ref, rd_ref,          # outputs
                   img_n_sc, row_m_sc, row_s_sc,         # scratch
                   row_acc_sc, diag_acc_sc,
                   *, n_col_tiles):
    g = pl.program_id(0)           # row-tile group (parallel across v7x cores)
    i = pl.program_id(1)           # row tile within the group
    j = pl.program_id(2)           # column (txt) tile
    n_i = pl.num_programs(1)
    n_j = pl.num_programs(2)

    tile = logits_ref.shape[0]     # square logits tile (TM == TN)
    b_cols = col_ref.shape[1]      # total number of txt columns (B)

    inv_temp = 1.0 / temp_ref[0]

    # ---- per-group init (first step of this group on this core) ------------
    @pl.when(jnp.logical_and(i == 0, j == 0))
    def _init_group():
        # col_ref row 0 = running column max, row 1 = running column sum-exp.
        # (-inf, 0) is a valid "empty" online-softmax state because
        # exp(-inf - finite) * 0 == 0 in IEEE f32; do not reorder these writes.
        col_ref[0:1, :] = jnp.full((1, b_cols), -jnp.inf, dtype=jnp.float32)
        col_ref[1:2, :] = jnp.zeros((1, b_cols), dtype=jnp.float32)
        row_acc_sc[...] = jnp.zeros_like(row_acc_sc)
        diag_acc_sc[...] = jnp.zeros_like(diag_acc_sc)
        rd_ref[...] = jnp.zeros_like(rd_ref)   # defensive init (review note)

    # ---- per-row-tile init: normalize img once, reuse across all j ---------
    @pl.when(j == 0)
    def _init_row_tile():
        row_m_sc[...] = jnp.full_like(row_m_sc, -jnp.inf)
        row_s_sc[...] = jnp.zeros_like(row_s_sc)
        img = img_ref[...].astype(jnp.float32)
        ss = jnp.sum(img * img, axis=1, keepdims=True)
        # F.normalize(x, dim=1) == x * rsqrt(max(||x||^2, eps^2)); 1/temperature
        # is folded into the same scale (EUP rsqrt + one VPU mul), so no
        # post-matmul (T, T) multiply is needed.
        scale = inv_temp * jax.lax.rsqrt(jnp.maximum(ss, _EPS * _EPS))
        img_n_sc[...] = (img * scale).astype(img_n_sc.dtype)

    # ---- normalize txt column tile (~3*T*D VPU ops vs 2*T*T*D MXU flops) ---
    txt = txt_ref[...].astype(jnp.float32)
    tss = jnp.sum(txt * txt, axis=1, keepdims=True)
    txt_n = (txt * jax.lax.rsqrt(jnp.maximum(tss, _EPS * _EPS))).astype(img_n_sc.dtype)

    # ---- (T, T) logits tile: contract last dims -> no transposed txt copy --
    logits = jax.lax.dot_general(
        img_n_sc[...], txt_n,
        dimension_numbers=(((1,), (1,)), ((), ())),
        preferred_element_type=jnp.float32)
    logits_ref[...] = logits.astype(logits_ref.dtype)

    # ---- online row (image -> text) softmax stats ---------------------------
    tile_row_max = jnp.max(logits, axis=1, keepdims=True)            # (T, 1)
    rm_new = jnp.maximum(row_m_sc[...], tile_row_max)                # (T, 1)
    p = jnp.exp(logits - rm_new)                                     # (T, T), single EUP pass
    row_s_sc[...] = (row_s_sc[...] * jnp.exp(row_m_sc[...] - rm_new)
                     + jnp.sum(p, axis=1, keepdims=True))
    row_m_sc[...] = rm_new

    # ---- online column (text -> image) softmax stats, reusing P ------------
    # sum_r exp(logits[r,c] - M) = sum_r p[r,c] * exp(rm_new[r] - M) with the
    # scalar reference M = max_r rm_new[r] >= every logit in this tile, so all
    # exponents below are <= 0 (no overflow).  Underflow only matters if the
    # logit spread inside one row tile exceeds ~87, i.e. temperature < ~0.023
    # for unit-norm inputs; fine for the default 0.07.
    # TODO(synk): add a clamped fallback (second exp pass) if the learnable
    # temperature can be driven very small.
    m_tile = jnp.max(rm_new, axis=0, keepdims=True)                  # (1, 1)
    w = jnp.exp(rm_new - m_tile)                                     # (T, 1)
    col_part = jnp.sum(p * w, axis=0, keepdims=True)                 # (1, T)
    # TODO(synk): a (1,T)x(T,T) MXU mat-vec could offload this axis-0 reduce
    # from the VPU/XLU if it ever becomes the binding slot.

    if n_col_tiles == 1:
        col_slice = slice(None)                                      # static full width
    else:
        col_slice = pl.ds(pl.multiple_of(j * tile, tile), tile)      # 128-aligned
    m_old = col_ref[0:1, col_slice]
    s_old = col_ref[1:2, col_slice]
    m_new = jnp.maximum(m_old, m_tile)
    s_new = s_old * jnp.exp(m_old - m_new) + col_part * jnp.exp(m_tile - m_new)
    col_ref[0:1, col_slice] = m_new
    col_ref[1:2, col_slice] = s_new

    # ---- diagonal: only the (T, T) column tile overlapping this row tile ---
    @pl.when(j == g * n_i + i)
    def _diag():
        r_idx = jax.lax.broadcasted_iota(jnp.int32, (tile, tile), 0)
        c_idx = jax.lax.broadcasted_iota(jnp.int32, (tile, tile), 1)
        d = jnp.where(r_idx == c_idx, logits, 0.0)
        diag_acc_sc[...] += jnp.sum(jnp.sum(d, axis=1, keepdims=True),
                                    axis=0, keepdims=True)

    # ---- row-tile finalize: fold row logsumexp into the group partial ------
    @pl.when(j == n_j - 1)
    def _finalize_row_tile():
        lse_row = jnp.log(row_s_sc[...]) + row_m_sc[...]             # (T, 1)
        row_acc_sc[...] += jnp.sum(lse_row, axis=0, keepdims=True)

    # ---- group finalize: export scalar partials (lane0=row, lane1=diag) ----
    @pl.when(jnp.logical_and(i == n_i - 1, j == n_j - 1))
    def _finalize_group():
        lane = jax.lax.broadcasted_iota(jnp.int32, rd_ref.shape, 1)
        rd_ref[...] = (jnp.where(lane == 0, row_acc_sc[...], 0.0)
                       + jnp.where(lane == 1, diag_acc_sc[...], 0.0))


def _pick_tile(batch):
    """Square logits tile. Prefer 512/256 (fills the 2x256^2 MXU on v6e/v7x,
    fine on v5e's 4x128^2); 128 only as a fallback; single tile otherwise."""
    if batch <= 512:
        return batch
    for t in (512, 256, 128):
        if batch % t == 0:
            return t
    return batch


def _vmem_limit_bytes():
    """~3/4 of physical VMEM: ~96 MiB on v5e/v6e (128 MiB), ~48 MiB on v7x (64 MiB)."""
    cap = 128 * 1024 * 1024
    try:
        cap = int(pltpu.get_tpu_info().vmem_capacity_bytes)
    except Exception:
        pass
    return min((cap // 4) * 3, 100 * 1024 * 1024)


def ntxent_loss(img_proj, txt_proj, temperature, *, tile=None, force_bf16_matmul=False):
    """CLIP-style symmetric InfoNCE. Returns (loss: f32 scalar, logits: (B, B))."""
    B, D = img_proj.shape
    assert txt_proj.shape == (B, D)
    temp = jnp.asarray(temperature, jnp.float32).reshape(1)

    if tile is None:
        tile = _pick_tile(B)
    assert B % tile == 0, "batch must be divisible by the logits tile size"
    assert tile == B or tile % 128 == 0, "partial-width tiles must be 128-aligned"
    n_tiles = B // tile
    # Leading "parallel" axis: on v7x each TensorCore takes one group of row
    # tiles; on single-core chips the axis simply runs sequentially.
    n_groups = 2 if (n_tiles >= 2 and n_tiles % 2 == 0) else 1
    n_i = n_tiles // n_groups
    n_j = n_tiles

    # MXU operand dtype. force_bf16_matmul=True casts f32 inputs to bf16
    # operands (recommended on v5e, where f32 matmul runs via ~3x slower
    # multi-pass bf16 emulation); default keeps f32-in -> f32 matmul semantics.
    if img_proj.dtype == jnp.bfloat16 or force_bf16_matmul:
        mm_dtype = jnp.bfloat16
    else:
        mm_dtype = jnp.float32
    logits_dtype = img_proj.dtype  # bf16 in => bf16 logits writeback

    grid_spec = pltpu.PrefetchScalarGridSpec(
        num_scalar_prefetch=0,
        grid=(n_groups, n_i, n_j),
        in_specs=[
            pl.BlockSpec(memory_space=pltpu.MemorySpace.SMEM),          # temperature
            pl.BlockSpec((tile, D), lambda g, i, j: (g * n_i + i, 0)),  # img row tile
            pl.BlockSpec((tile, D), lambda g, i, j: (j, 0)),            # txt col tile
        ],
        out_specs=(
            pl.BlockSpec((tile, tile), lambda g, i, j: (g * n_i + i, j)),  # logits tile
            pl.BlockSpec((None, 2, B), lambda g, i, j: (g, 0, 0)),         # per-group col m/s
            pl.BlockSpec((None, 1, 128), lambda g, i, j: (g, 0, 0)),       # per-group row/diag sums
        ),
        scratch_shapes=[
            pltpu.VMEM((tile, D), mm_dtype),     # normalized img row tile (reused across j)
            pltpu.VMEM((tile, 1), jnp.float32),  # running row max
            pltpu.VMEM((tile, 1), jnp.float32),  # running row sum-exp
            pltpu.VMEM((1, 1), jnp.float32),     # group sum of row logsumexp
            pltpu.VMEM((1, 1), jnp.float32),     # group sum of diagonal logits
        ],
    )

    logits, col_stats, rd_stats = pl.pallas_call(
        functools.partial(_ntxent_kernel, n_col_tiles=n_j),
        out_shape=(
            jax.ShapeDtypeStruct((B, B), logits_dtype),
            jax.ShapeDtypeStruct((n_groups, 2, B), jnp.float32),
            jax.ShapeDtypeStruct((n_groups, 1, 128), jnp.float32),
        ),
        grid_spec=grid_spec,
        compiler_params=pltpu.CompilerParams(
            dimension_semantics=("parallel", "arbitrary", "arbitrary"),
            vmem_limit_bytes=_vmem_limit_bytes(),
        ),
    )(temp, img_proj, txt_proj)

    # O(n_groups * B) epilogue: combine per-group online-softmax partials.
    col_m = col_stats[:, 0, :]                           # (G, B) running column max
    col_s = col_stats[:, 1, :]                           # (G, B) running column sum-exp
    m = jnp.max(col_m, axis=0)                           # (B,)
    s = jnp.sum(col_s * jnp.exp(col_m - m[None, :]), axis=0)
    sum_lse_col = jnp.sum(jnp.log(s) + m)
    sum_lse_row = jnp.sum(rd_stats[:, 0, 0])
    sum_diag = jnp.sum(rd_stats[:, 0, 1])
    inv_b = 1.0 / float(B)
    loss = 0.5 * (sum_lse_row + sum_lse_col) * inv_b - sum_diag * inv_b
    return loss, logits


def _ref(img, txt, t):
    img_n = img / jnp.maximum(jnp.linalg.norm(img, axis=1, keepdims=True), 1e-12)
    txt_n = txt / jnp.maximum(jnp.linalg.norm(txt, axis=1, keepdims=True), 1e-12)
    lg = img_n @ txt_n.T / t
    tgt = jnp.arange(lg.shape[0])
    li2t = jnp.mean(jax.nn.logsumexp(lg, axis=1) - lg[tgt, tgt])
    lt2i = jnp.mean(jax.nn.logsumexp(lg, axis=0) - lg[tgt, tgt])
    return (li2t + lt2i) / 2, lg


if __name__ == "__main__":
    # nn.Parameter(torch.tensor(0.07)) at init
    temperature = jnp.float32(0.07)

    # Small single-tile case (grid (1,1,1)).
    B, D = 8, 32
    key = jax.random.PRNGKey(0)
    k_img, k_txt, k_img2, k_txt2 = jax.random.split(key, 4)
    img_proj = jax.random.normal(k_img, (B, D), dtype=jnp.float32)
    txt_proj = jax.random.normal(k_txt, (B, D), dtype=jnp.float32)

    loss, logits = ntxent_loss(img_proj, txt_proj, temperature)
    jax.block_until_ready((loss, logits))
    ref_loss, ref_logits = _ref(img_proj, txt_proj, temperature)
    assert jnp.allclose(loss, ref_loss, atol=1e-3, rtol=1e-3), (loss, ref_loss)
    assert jnp.allclose(logits, ref_logits, atol=1e-3, rtol=1e-3)

    # Multi-tile / multi-group case (grid (2,1,2)), forced 128 tile.
    B2, D2 = 256, 64
    img2 = jax.random.normal(k_img2, (B2, D2), dtype=jnp.float32)
    txt2 = jax.random.normal(k_txt2, (B2, D2), dtype=jnp.float32)
    loss2, logits2 = ntxent_loss(img2, txt2, temperature, tile=128)
    jax.block_until_ready((loss2, logits2))
    ref_loss2, ref_logits2 = _ref(img2, txt2, temperature)
    assert jnp.allclose(loss2, ref_loss2, atol=1e-3, rtol=1e-3), (loss2, ref_loss2)
    assert jnp.allclose(logits2, ref_logits2, atol=1e-3, rtol=1e-3)

    print("KERNEL_OK")
</pallas_src>

<mosaic_0001>
module attributes {stable_mosaic.version = 11 : i64} {
  func.func @_ntxent_kernel(%arg0: i32, %arg1: i32, %arg2: i32, %arg3: memref<1xf32, #tpu.memory_space<smem>>, %arg4: memref<8x32xf32, #tpu.memory_space<vmem>>, %arg5: memref<8x32xf32, #tpu.memory_space<vmem>>, %arg6: memref<8x8xf32, #tpu.memory_space<vmem>>, %arg7: memref<1x2x8xf32, #tpu.memory_space<vmem>>, %arg8: memref<1x1x128xf32, #tpu.memory_space<vmem>>, %arg9: memref<8x32xf32, #tpu.memory_space<vmem>>, %arg10: memref<8x1xf32, #tpu.memory_space<vmem>>, %arg11: memref<8x1xf32, #tpu.memory_space<vmem>>, %arg12: memref<1x1xf32, #tpu.memory_space<vmem>>, %arg13: memref<1x1xf32, #tpu.memory_space<vmem>>) attributes {dimension_semantics = [#tpu.dimension_semantics<parallel>, #tpu.dimension_semantics<arbitrary>, #tpu.dimension_semantics<arbitrary>], iteration_bounds = array<i64: 1, 1, 1>, scalar_prefetch = 0 : i64, scratch_operands = 5 : i64, tpu.core_type = #tpu.core_type<tc>, window_params = [{transform_indices = @transform_0, window_bounds = array<i64: 1>}, {transform_indices = @transform_1, window_bounds = array<i64: 8, 32>}, {transform_indices = @transform_2, window_bounds = array<i64: 8, 32>}, {transform_indices = @transform_3, window_bounds = array<i64: 8, 8>}, {transform_indices = @transform_4, window_bounds = array<i64: 1, 2, 8>}, {transform_indices = @transform_5, window_bounds = array<i64: 1, 1, 128>}]} {
    %c0 = arith.constant 0 : index
    %0 = memref.load %arg3[%c0] : memref<1xf32, #tpu.memory_space<smem>>
    %cst = arith.constant 1.000000e+00 : f32
    %1 = arith.divf %cst, %0 : f32
    %c0_i32 = arith.constant 0 : i32
    %2 = arith.cmpi eq, %arg1, %c0_i32 : i32
    %c0_i32_0 = arith.constant 0 : i32
    %3 = arith.cmpi eq, %arg2, %c0_i32_0 : i32
    %4 = arith.andi %2, %3 : i1
    %5 = arith.extui %4 : i1 to i32
    %c0_i32_1 = arith.constant 0 : i32
    %6 = arith.cmpi ne, %5, %c0_i32_1 : i32
    scf.if %6 {
      %cst_44 = arith.constant 0xFF800000 : f32
      %81 = vector.broadcast %cst_44 : f32 to vector<1x8xf32>
      %c0_45 = arith.constant 0 : index
      %c0_46 = arith.constant 0 : index
      %c0_47 = arith.constant 0 : index
      %82 = vector.load %arg7[%c0_45, %c0_46, %c0_47] : memref<1x2x8xf32, #tpu.memory_space<vmem>>, vector<1x1x8xf32>
      %83 = vector.shape_cast %82 : vector<1x1x8xf32> to vector<1x8xf32>
      %84 = vector.shape_cast %81 : vector<1x8xf32> to vector<1x1x8xf32>
      tpu.vector_store %arg7[%c0_45, %c0_46, %c0_47], %84 {strides = array<i32>} : memref<1x2x8xf32, #tpu.memory_space<vmem>>, vector<1x1x8xf32>,
      %cst_48 = arith.constant 0.000000e+00 : f32
      %85 = vector.broadcast %cst_48 : f32 to vector<1x8xf32>
      %c0_49 = arith.constant 0 : index
      %c1_50 = arith.constant 1 : index
      %c0_51 = arith.constant 0 : index
      %86 = vector.load %arg7[%c0_49, %c1_50, %c0_51] : memref<1x2x8xf32, #tpu.memory_space<vmem>>, vector<1x1x8xf32>
      %87 = vector.shape_cast %86 : vector<1x1x8xf32> to vector<1x8xf32>
      %88 = vector.shape_cast %85 : vector<1x8xf32> to vector<1x1x8xf32>
      tpu.vector_store %arg7[%c0_49, %c1_50, %c0_51], %88 {strides = array<i32>} : memref<1x2x8xf32, #tpu.memory_space<vmem>>, vector<1x1x8xf32>,
      %cst_52 = arith.constant 0.000000e+00 : f32
      %89 = vector.broadcast %cst_52 : f32 to vector<1x1xf32>
      %c0_53 = arith.constant 0 : index
      %c0_54 = arith.constant 0 : index
      %90 = vector.load %arg12[%c0_53, %c0_54] : memref<1x1xf32, #tpu.memory_space<vmem>>, vector<1x1xf32>
      tpu.vector_store %arg12[%c0_53, %c0_54], %89 {strides = array<i32>} : memref<1x1xf32, #tpu.memory_space<vmem>>, vector<1x1xf32>,
      %cst_55 = arith.constant 0.000000e+00 : f32
      %91 = vector.broadcast %cst_55 : f32 to vector<1x1xf32>
      %c0_56 = arith.constant 0 : index
      %c0_57 = arith.constant 0 : index
      %92 = vector.load %arg13[%c0_56, %c0_57] : memref<1x1xf32, #tpu.memory_space<vmem>>, vector<1x1xf32>
      tpu.vector_store %arg13[%c0_56, %c0_57], %91 {strides = array<i32>} : memref<1x1xf32, #tpu.memory_space<vmem>>, vector<1x1xf32>,
      %cst_58 = arith.constant 0.000000e+00 : f32
      %93 = vector.broadcast %cst_58 : f32 to vector<1x128xf32>
      %c0_59 = arith.constant 0 : index
      %c0_60 = arith.constant 0 : index
      %c0_61 = arith.constant 0 : index
      %94 = vector.load %arg8[%c0_59, %c0_60, %c0_61] : memref<1x1x128xf32, #tpu.memory_space<vmem>>, vector<1x1x128xf32>
      %95 = vector.shape_cast %94 : vector<1x1x128xf32> to vector<1x128xf32>
      %96 = vector.shape_cast %93 : vector<1x128xf32> to vector<1x1x128xf32>
      tpu.vector_store %arg8[%c0_59, %c0_60, %c0_61], %96 {strides = array<i32>} : memref<1x1x128xf32, #tpu.memory_space<vmem>>, vector<1x1x128xf32>,
    } else {
    }
    %c0_i32_2 = arith.constant 0 : i32
    %7 = arith.cmpi eq, %arg2, %c0_i32_2 : i32
    %8 = arith.extui %7 : i1 to i32
    %c0_i32_3 = arith.constant 0 : i32
    %9 = arith.cmpi ne, %8, %c0_i32_3 : i32
    scf.if %9 {
      %cst_44 = arith.constant 0xFF800000 : f32
      %81 = vector.broadcast %cst_44 : f32 to vector<8x1xf32>
      %c0_45 = arith.constant 0 : index
      %c0_46 = arith.constant 0 : index
      %82 = vector.load %arg10[%c0_45, %c0_46] : memref<8x1xf32, #tpu.memory_space<vmem>>, vector<8x1xf32>
      tpu.vector_store %arg10[%c0_45, %c0_46], %81 {strides = array<i32>} : memref<8x1xf32, #tpu.memory_space<vmem>>, vector<8x1xf32>,
      %cst_47 = arith.constant 0.000000e+00 : f32
      %83 = vector.broadcast %cst_47 : f32 to vector<8x1xf32>
      %c0_48 = arith.constant 0 : index
      %c0_49 = arith.constant 0 : index
      %84 = vector.load %arg11[%c0_48, %c0_49] : memref<8x1xf32, #tpu.memory_space<vmem>>, vector<8x1xf32>
      tpu.vector_store %arg11[%c0_48, %c0_49], %83 {strides = array<i32>} : memref<8x1xf32, #tpu.memory_space<vmem>>, vector<8x1xf32>,
      %c0_50 = arith.constant 0 : index
      %c0_51 = arith.constant 0 : index
      %85 = vector.load %arg4[%c0_50, %c0_51] : memref<8x32xf32, #tpu.memory_space<vmem>>, vector<8x32xf32>
      %86 = arith.mulf %85, %85 : vector<8x32xf32>
      %cst_52 = arith.constant dense<0.000000e+00> : vector<8xf32>
      %87 = vector.multi_reduction <add>, %86, %cst_52 [1] : vector<8x32xf32> to vector<8xf32>
      %88 = vector.shape_cast %87 : vector<8xf32> to vector<8x1xf32>
      %cst_53 = arith.constant 1.000000e-24 : f32
      %89 = vector.broadcast %cst_53 : f32 to vector<8x1xf32>
      %90 = arith.maximumf %88, %89 : vector<8x1xf32>
      %91 = math.rsqrt %90 : vector<8x1xf32>
      %92 = vector.broadcast %1 : f32 to vector<8x1xf32>
      %93 = arith.mulf %92, %91 : vector<8x1xf32>
      %94 = vector.broadcast %93 : vector<8x1xf32> to vector<8x32xf32>
      %95 = arith.mulf %85, %94 : vector<8x32xf32>
      %c0_54 = arith.constant 0 : index
      %c0_55 = arith.constant 0 : index
      %96 = vector.load %arg9[%c0_54, %c0_55] : memref<8x32xf32, #tpu.memory_space<vmem>>, vector<8x32xf32>
      tpu.vector_store %arg9[%c0_54, %c0_55], %95 {strides = array<i32>} : memref<8x32xf32, #tpu.memory_space<vmem>>, vector<8x32xf32>,
    } else {
    }
    %c0_4 = arith.constant 0 : index
    %c0_5 = arith.constant 0 : index
    %10 = vector.load %arg5[%c0_4, %c0_5] : memref<8x32xf32, #tpu.memory_space<vmem>>, vector<8x32xf32>
    %11 = arith.mulf %10, %10 : vector<8x32xf32>
    %cst_6 = arith.constant dense<0.000000e+00> : vector<8xf32>
    %12 = vector.multi_reduction <add>, %11, %cst_6 [1] : vector<8x32xf32> to vector<8xf32>
    %13 = vector.shape_cast %12 : vector<8xf32> to vector<8x1xf32>
    %cst_7 = arith.constant 1.000000e-24 : f32
    %14 = vector.broadcast %cst_7 : f32 to vector<8x1xf32>
    %15 = arith.maximumf %13, %14 : vector<8x1xf32>
    %16 = math.rsqrt %15 : vector<8x1xf32>
    %17 = vector.broadcast %16 : vector<8x1xf32> to vector<8x32xf32>
    %18 = arith.mulf %10, %17 : vector<8x32xf32>
    %c0_8 = arith.constant 0 : index
    %c0_9 = arith.constant 0 : index
    %19 = vector.load %arg9[%c0_8, %c0_9] : memref<8x32xf32, #tpu.memory_space<vmem>>, vector<8x32xf32>
    %cst_10 = arith.constant dense<0.000000e+00> : vector<8x8xf32>
    %20 = tpu.matmul %19, %18, %cst_10 {dimension_numbers = #tpu.dot_dimension_numbers<[1], [1], [0], [0], [0, 0, 1, 0], [], []>} : vector<8x32xf32>, vector<8x32xf32>, vector<8x8xf32> -> vector<8x8xf32>
    %c0_11 = arith.constant 0 : index
    %c0_12 = arith.constant 0 : index
    %21 = vector.load %arg6[%c0_11, %c0_12] : memref<8x8xf32, #tpu.memory_space<vmem>>, vector<8x8xf32>
    tpu.vector_store %arg6[%c0_11, %c0_12], %20 {strides = array<i32>} : memref<8x8xf32, #tpu.memory_space<vmem>>, vector<8x8xf32>,
    %cst_13 = arith.constant dense<0xFF800000> : vector<8xf32>
    %22 = vector.multi_reduction <maximumf>, %20, %cst_13 [1] : vector<8x8xf32> to vector<8xf32>
    %23 = vector.shape_cast %22 : vector<8xf32> to vector<8x1xf32>
    %c0_14 = arith.constant 0 : index
    %c0_15 = arith.constant 0 : index
    %24 = vector.load %arg10[%c0_14, %c0_15] : memref<8x1xf32, #tpu.memory_space<vmem>>, vector<8x1xf32>
    %25 = arith.maximumf %24, %23 : vector<8x1xf32>
    %26 = vector.broadcast %25 : vector<8x1xf32> to vector<8x8xf32>
    %27 = arith.subf %20, %26 : vector<8x8xf32>
    %28 = math.exp %27 : vector<8x8xf32>
    %c0_16 = arith.constant 0 : index
    %c0_17 = arith.constant 0 : index
    %29 = vector.load %arg11[%c0_16, %c0_17] : memref<8x1xf32, #tpu.memory_space<vmem>>, vector<8x1xf32>
    %c0_18 = arith.constant 0 : index
    %c0_19 = arith.constant 0 : index
    %30 = vector.load %arg10[%c0_18, %c0_19] : memref<8x1xf32, #tpu.memory_space<vmem>>, vector<8x1xf32>
    %31 = arith.subf %30, %25 : vector<8x1xf32>
    %32 = math.exp %31 : vector<8x1xf32>
    %33 = arith.mulf %29, %32 : vector<8x1xf32>
    %cst_20 = arith.constant dense<0.000000e+00> : vector<8xf32>
    %34 = vector.multi_reduction <add>, %28, %cst_20 [1] : vector<8x8xf32> to vector<8xf32>
    %35 = vector.shape_cast %34 : vector<8xf32> to vector<8x1xf32>
    %36 = arith.addf %33, %35 : vector<8x1xf32>
    %c0_21 = arith.constant 0 : index
    %c0_22 = arith.constant 0 : index
    %37 = vector.load %arg11[%c0_21, %c0_22] : memref<8x1xf32, #tpu.memory_space<vmem>>, vector<8x1xf32>
    tpu.vector_store %arg11[%c0_21, %c0_22], %36 {strides = array<i32>} : memref<8x1xf32, #tpu.memory_space<vmem>>, vector<8x1xf32>,
    %c0_23 = arith.constant 0 : index
    %c0_24 = arith.constant 0 : index
    %38 = vector.load %arg10[%c0_23, %c0_24] : memref<8x1xf32, #tpu.memory_space<vmem>>, vector<8x1xf32>
    tpu.vector_store %arg10[%c0_23, %c0_24], %25 {strides = array<i32>} : memref<8x1xf32, #tpu.memory_space<vmem>>, vector<8x1xf32>,
    %cst_25 = arith.constant dense<0xFF800000> : vector<1xf32>
    %39 = vector.multi_reduction <maximumf>, %25, %cst_25 [0] : vector<8x1xf32> to vector<1xf32>
    %40 = vector.shape_cast %39 : vector<1xf32> to vector<1x1xf32>
    %41 = vector.broadcast %40 : vector<1x1xf32> to vector<8x1xf32>
    %42 = arith.subf %25, %41 : vector<8x1xf32>
    %43 = math.exp %42 : vector<8x1xf32>
    %44 = vector.broadcast %43 : vector<8x1xf32> to vector<8x8xf32>
    %45 = arith.mulf %28, %44 : vector<8x8xf32>
    %cst_26 = arith.constant dense<0.000000e+00> : vector<8xf32>
    %46 = vector.multi_reduction <add>, %45, %cst_26 [0] : vector<8x8xf32> to vector<8xf32>
    %47 = vector.shape_cast %46 : vector<8xf32> to vector<1x8xf32>
    %c0_27 = arith.constant 0 : index
    %c0_28 = arith.constant 0 : index
    %c0_29 = arith.constant 0 : index
    %48 = vector.load %arg7[%c0_27, %c0_28, %c0_29] : memref<1x2x8xf32, #tpu.memory_space<vmem>>, vector<1x1x8xf32>
    %49 = vector.shape_cast %48 : vector<1x1x8xf32> to vector<1x8xf32>
    %c0_30 = arith.constant 0 : index
    %c1 = arith.constant 1 : index
    %c0_31 = arith.constant 0 : index
    %50 = vector.load %arg7[%c0_30, %c1, %c0_31] : memref<1x2x8xf32, #tpu.memory_space<vmem>>, vector<1x1x8xf32>
    %51 = vector.shape_cast %50 : vector<1x1x8xf32> to vector<1x8xf32>
    %52 = vector.broadcast %40 : vector<1x1xf32> to vector<1x8xf32>
    %53 = arith.maximumf %49, %52 : vector<1x8xf32>
    %54 = arith.subf %49, %53 : vector<1x8xf32>
    %55 = math.exp %54 : vector<1x8xf32>
    %56 = arith.mulf %51, %55 : vector<1x8xf32>
    %57 = vector.broadcast %40 : vector<1x1xf32> to vector<1x8xf32>
    %58 = arith.subf %57, %53 : vector<1x8xf32>
    %59 = math.exp %58 : vector<1x8xf32>
    %60 = arith.mulf %47, %59 : vector<1x8xf32>
    %61 = arith.addf %56, %60 : vector<1x8xf32>
    %c0_32 = arith.constant 0 : index
    %c0_33 = arith.constant 0 : index
    %c0_34 = arith.constant 0 : index
    %62 = vector.load %arg7[%c0_32, %c0_33, %c0_34] : memref<1x2x8xf32, #tpu.memory_space<vmem>>, vector<1x1x8xf32>
    %63 = vector.shape_cast %62 : vector<1x1x8xf32> to vector<1x8xf32>
    %64 = vector.shape_cast %53 : vector<1x8xf32> to vector<1x1x8xf32>
    tpu.vector_store %arg7[%c0_32, %c0_33, %c0_34], %64 {strides = array<i32>} : memref<1x2x8xf32, #tpu.memory_space<vmem>>, vector<1x1x8xf32>,
    %c0_35 = arith.constant 0 : index
    %c1_36 = arith.constant 1 : index
    %c0_37 = arith.constant 0 : index
    %65 = vector.load %arg7[%c0_35, %c1_36, %c0_37] : memref<1x2x8xf32, #tpu.memory_space<vmem>>, vector<1x1x8xf32>
    %66 = vector.shape_cast %65 : vector<1x1x8xf32> to vector<1x8xf32>
    %67 = vector.shape_cast %61 : vector<1x8xf32> to vector<1x1x8xf32>
    tpu.vector_store %arg7[%c0_35, %c1_36, %c0_37], %67 {strides = array<i32>} : memref<1x2x8xf32, #tpu.memory_space<vmem>>, vector<1x1x8xf32>,
    %c1_i32 = arith.constant 1 : i32
    %68 = arith.muli %arg0, %c1_i32 : i32
    %69 = arith.addi %68, %arg1 : i32
    %70 = arith.cmpi eq, %arg2, %69 : i32
    %71 = arith.extui %70 : i1 to i32
    %c0_i32_38 = arith.constant 0 : i32
    %72 = arith.cmpi ne, %71, %c0_i32_38 : i32
    scf.if %72 {
      %81 = tpu.iota {dimensions = array<i32: 0>} : vector<8x8xi32>
      %82 = tpu.iota {dimensions = array<i32: 1>} : vector<8x8xi32>
      %83 = arith.cmpi eq, %81, %82 : vector<8x8xi32>
      %cst_44 = arith.constant 0.000000e+00 : f32
      %84 = vector.broadcast %cst_44 : f32 to vector<8x8xf32>
      %85 = arith.select %83, %20, %84 : vector<8x8xi1>, vector<8x8xf32>
      %c0_45 = arith.constant 0 : index
      %c0_46 = arith.constant 0 : index
      %86 = vector.load %arg13[%c0_45, %c0_46] : memref<1x1xf32, #tpu.memory_space<vmem>>, vector<1x1xf32>
      %cst_47 = arith.constant dense<0.000000e+00> : vector<8xf32>
      %87 = vector.multi_reduction <add>, %85, %cst_47 [1] : vector<8x8xf32> to vector<8xf32>
      %88 = vector.shape_cast %87 : vector<8xf32> to vector<8x1xf32>
      %cst_48 = arith.constant dense<0.000000e+00> : vector<1xf32>
      %89 = vector.multi_reduction <add>, %88, %cst_48 [0] : vector<8x1xf32> to vector<1xf32>
      %90 = vector.shape_cast %89 : vector<1xf32> to vector<1x1xf32>
      %91 = arith.addf %86, %90 : vector<1x1xf32>
      %c0_49 = arith.constant 0 : index
      %c0_50 = arith.constant 0 : index
      %92 = vector.load %arg13[%c0_49, %c0_50] : memref<1x1xf32, #tpu.memory_space<vmem>>, vector<1x1xf32>
      tpu.vector_store %arg13[%c0_49, %c0_50], %91 {strides = array<i32>} : memref<1x1xf32, #tpu.memory_space<vmem>>, vector<1x1xf32>,
    } else {
    }
    %c0_i32_39 = arith.constant 0 : i32
    %73 = arith.cmpi eq, %arg2, %c0_i32_39 : i32
    %74 = arith.extui %73 : i1 to i32
    %c0_i32_40 = arith.constant 0 : i32
    %75 = arith.cmpi ne, %74, %c0_i32_40 : i32
    scf.if %75 {
      %c0_44 = arith.constant 0 : index
      %c0_45 = arith.constant 0 : index
      %81 = vector.load %arg11[%c0_44, %c0_45] : memref<8x1xf32, #tpu.memory_space<vmem>>, vector<8x1xf32>
      %82 = math.log %81 : vector<8x1xf32>
      %c0_46 = arith.constant 0 : index
      %c0_47 = arith.constant 0 : index
      %83 = vector.load %arg10[%c0_46, %c0_47] : memref<8x1xf32, #tpu.memory_space<vmem>>, vector<8x1xf32>
      %84 = arith.addf %82, %83 : vector<8x1xf32>
      %c0_48 = arith.constant 0 : index
      %c0_49 = arith.constant 0 : index
      %85 = vector.load %arg12[%c0_48, %c0_49] : memref<1x1xf32, #tpu.memory_space<vmem>>, vector<1x1xf32>
      %cst_50 = arith.constant dense<0.000000e+00> : vector<1xf32>
      %86 = vector.multi_reduction <add>, %84, %cst_50 [0] : vector<8x1xf32> to vector<1xf32>
      %87 = vector.shape_cast %86 : vector<1xf32> to vector<1x1xf32>
      %88 = arith.addf %85, %87 : vector<1x1xf32>
      %c0_51 = arith.constant 0 : index
      %c0_52 = arith.constant 0 : index
      %89 = vector.load %arg12[%c0_51, %c0_52] : memref<1x1xf32, #tpu.memory_space<vmem>>, vector<1x1xf32>
      tpu.vector_store %arg12[%c0_51, %c0_52], %88 {strides = array<i32>} : memref<1x1xf32, #tpu.memory_space<vmem>>, vector<1x1xf32>,
    } else {
    }
    %c0_i32_41 = arith.constant 0 : i32
    %76 = arith.cmpi eq, %arg1, %c0_i32_41 : i32
    %c0_i32_42 = arith.constant 0 : i32
    %77 = arith.cmpi eq, %arg2, %c0_i32_42 : i32
    %78 = arith.andi %76, %77 : i1
    %79 = arith.extui %78 : i1 to i32
    %c0_i32_43 = arith.constant 0 : i32
    %80 = arith.cmpi ne, %79, %c0_i32_43 : i32
    scf.if %80 {
      %81 = tpu.iota {dimensions = array<i32: 1>} : vector<1x128xi32>
      %c0_i32_44 = arith.constant 0 : i32
      %82 = vector.broadcast %c0_i32_44 : i32 to vector<1x128xi32>
      %83 = arith.cmpi eq, %81, %82 : vector<1x128xi32>
      %c0_45 = arith.constant 0 : index
      %c0_46 = arith.constant 0 : index
      %84 = vector.load %arg12[%c0_45, %c0_46] : memref<1x1xf32, #tpu.memory_space<vmem>>, vector<1x1xf32>
      %cst_47 = arith.constant 0.000000e+00 : f32
      %85 = vector.shape_cast %84 : vector<1x1xf32> to vector<1x1xf32>
      %86 = vector.broadcast %85 : vector<1x1xf32> to vector<1x128xf32>
      %87 = vector.broadcast %cst_47 : f32 to vector<1x128xf32>
      %88 = arith.select %83, %86, %87 : vector<1x128xi1>, vector<1x128xf32>
      %c1_i32_48 = arith.constant 1 : i32
      %89 = vector.broadcast %c1_i32_48 : i32 to vector<1x128xi32>
      %90 = arith.cmpi eq, %81, %89 : vector<1x128xi32>
      %c0_49 = arith.constant 0 : index
      %c0_50 = arith.constant 0 : index
      %91 = vector.load %arg13[%c0_49, %c0_50] : memref<1x1xf32, #tpu.memory_space<vmem>>, vector<1x1xf32>
      %cst_51 = arith.constant 0.000000e+00 : f32
      %92 = vector.shape_cast %91 : vector<1x1xf32> to vector<1x1xf32>
      %93 = vector.broadcast %92 : vector<1x1xf32> to vector<1x128xf32>
      %94 = vector.broadcast %cst_51 : f32 to vector<1x128xf32>
      %95 = arith.select %90, %93, %94 : vector<1x128xi1>, vector<1x128xf32>
      %96 = arith.addf %88, %95 : vector<1x128xf32>
      %c0_52 = arith.constant 0 : index
      %c0_53 = arith.constant 0 : index
      %c0_54 = arith.constant 0 : index
      %97 = vector.load %arg8[%c0_52, %c0_53, %c0_54] : memref<1x1x128xf32, #tpu.memory_space<vmem>>, vector<1x1x128xf32>
      %98 = vector.shape_cast %97 : vector<1x1x128xf32> to vector<1x128xf32>
      %99 = vector.shape_cast %96 : vector<1x128xf32> to vector<1x1x128xf32>
      tpu.vector_store %arg8[%c0_52, %c0_53, %c0_54], %99 {strides = array<i32>} : memref<1x1x128xf32, #tpu.memory_space<vmem>>, vector<1x1x128xf32>,
    } else {
    }
    return
  }
  func.func @transform_0(%arg0: i32, %arg1: i32, %arg2: i32) -> i32 {
    %c0_i32 = arith.constant 0 : i32
    %c0_i32_0 = arith.constant 0 : i32
    return %c0_i32 : i32
  }
  func.func @transform_1(%arg0: i32, %arg1: i32, %arg2: i32) -> (i32, i32) {
    %c1_i32 = arith.constant 1 : i32
    %0 = arith.muli %arg0, %c1_i32 : i32
    %1 = arith.addi %0, %arg1 : i32
    %c0_i32 = arith.constant 0 : i32
    %c0_i32_0 = arith.constant 0 : i32
    return %1, %c0_i32 : i32, i32
  }
  func.func @transform_2(%arg0: i32, %arg1: i32, %arg2: i32) -> (i32, i32) {
    %c0_i32 = arith.constant 0 : i32
    %c0_i32_0 = arith.constant 0 : i32
    return %arg2, %c0_i32 : i32, i32
  }
  func.func @transform_3(%arg0: i32, %arg1: i32, %arg2: i32) -> (i32, i32) {
    %c1_i32 = arith.constant 1 : i32
    %0 = arith.muli %arg0, %c1_i32 : i32
    %1 = arith.addi %0, %arg1 : i32
    %c0_i32 = arith.constant 0 : i32
    return %1, %arg2 : i32, i32
  }
  func.func @transform_4(%arg0: i32, %arg1: i32, %arg2: i32) -> (i32, i32, i32) {
    %c0_i32 = arith.constant 0 : i32
    %c0_i32_0 = arith.constant 0 : i32
    %c0_i32_1 = arith.constant 0 : i32
    return %arg0, %c0_i32, %c0_i32_0 : i32, i32, i32
  }
  func.func @transform_5(%arg0: i32, %arg1: i32, %arg2: i32) -> (i32, i32, i32) {
    %c0_i32 = arith.constant 0 : i32
    %c0_i32_0 = arith.constant 0 : i32
    %c0_i32_1 = arith.constant 0 : i32
    return %arg0, %c0_i32, %c0_i32_0 : i32, i32, i32
  }
}

</mosaic_0001>

<llo_original>
// kernel: tpu_custom_call.1
$region0: #{tpu_custom_call.1}
  #allocation0 [shape = 'u32[]', space=smem, size = 0x4, offset = 0x4, fixed_abs, tag = 'smem constant byte address 0x4 - core index']
  #allocation1 [shape = 'u32[144,128]{1,0:T(1,128)}', space=vmem, size = 0x12000, scoped, tag = 'internal scratch']
  #allocation2 [shape = 'f32[8,32]{1,0:T(8,128)}', space=vmem, size = 0x1000, scoped, tag = 'scratch operand']
  #allocation3 [shape = 'f32[8,1]{1,0:T(8,128)}', space=vmem, size = 0x1000, scoped, tag = 'scratch operand']
  #allocation4 [shape = 'f32[8,1]{1,0:T(8,128)}', space=vmem, size = 0x1000, scoped, tag = 'scratch operand']
  #allocation5 [shape = 'f32[1,1]{1,0:T(1,128)}', space=vmem, size = 0x200, scoped, tag = 'scratch operand']
  #allocation6 [shape = 'f32[1,1]{1,0:T(1,128)}', space=vmem, size = 0x200, scoped, tag = 'scratch operand']
  #allocation7 [shape = 'f32[1]{0:T(128)S(6)}', space=smem, size = 0x200, scoped, tag = 'scoped memory for tpu_custom_call.1']
  %s0 = inlined_call_operand.<no memory space> [shape: f32[1], index: 0, kind: input, shape index: {}]
  %s1 = inlined_call_operand.hbm [shape: f32[8,32], index: 1, kind: input, shape index: {}]
  %s2 = inlined_call_operand.hbm [shape: f32[8,32], index: 2, kind: input, shape index: {}]
  %s3 = inlined_call_operand.hbm [shape: f32[8,8], index: 3, kind: output, shape index: {0}]
  %s4 = inlined_call_operand.hbm [shape: f32[1,2,8], index: 4, kind: output, shape index: {1}]
  %s5 = inlined_call_operand.hbm [shape: f32[1,1,128], index: 5, kind: output, shape index: {2}]
  %6 = xla_tuple %s3, %s4, %s5
  %s7 = sld [smem:[#allocation0]]
  $region66: #{tpu_custom_call.1} parent=0
    _
  %s9 = ssub.s32 1, %s7
  %s10 = scalar_select 0, %s9, %s7
  %11 = sst [smem:[#allocation7]] %s0
  $region1: #{tpu_custom_call.1} parent=0
    #allocation8 [shape = 'u8[4096]{0}', space=vmem, size = 0x1000, scoped, tag = 'input window, operand 1, single buffered']
    #allocation9 [shape = 's32[1]{0}', space=sflag, size = 0x4, scoped, tag = 'scoped memory for tpu_custom_call.1']
    #allocation10 [shape = 's32[1]{0}', space=sflag, size = 0x4, scoped, tag = 'scoped memory for tpu_custom_call.1']
    #allocation11 [shape = 'u8[4096]{0}', space=vmem, size = 0x1000, scoped, tag = 'input window, operand 2, single buffered']
    #allocation12 [shape = 's32[1]{0}', space=sflag, size = 0x4, scoped, tag = 'scoped memory for tpu_custom_call.1']
    #allocation13 [shape = 'u8[4096]{0}', space=vmem, size = 0x1000, scoped, tag = 'output window, operand 0, single buffered']
    #allocation14 [shape = 'u8[1024]{0}', space=vmem, size = 0x400, scoped, tag = 'output window, operand 1, single buffered']
    #allocation15 [shape = 's32[1]{0}', space=sflag, size = 0x4, scoped, tag = 'scoped memory for tpu_custom_call.1']
    #allocation16 [shape = 'u8[512]{0}', space=vmem, size = 0x400, scoped, tag = 'output window, operand 2, single buffered']
    %12 = vsyncpa [#allocation9], 0
    %13 = vsyncpa [#allocation12], 0
    %14 = vsyncpa [#allocation10], 0
    %15 = vsyncpa [#allocation15], 0
    // Predicated region
    $region2: #{tpu_custom_call.1} parent=1 // pred_check
      _
    $region3: #{tpu_custom_call.1} parent=1 // pred_check_branch
      %17 = sbr.rel (0) target = $region5
    $region4: #{tpu_custom_call.1} parent=1 // pred_region
      _
    $region5: #{tpu_custom_call.1} parent=1 // pred_fallthru
      _
    // Predicated region
    $region6: #{tpu_custom_call.1} parent=1 // pred_check
      _
    $region7: #{tpu_custom_call.1} parent=1 // pred_check_branch
      %19 = sbr.rel (0) target = $region9
    $region8: #{tpu_custom_call.1} parent=1 // pred_region
      %s20 = sadd.s32 0, 0
      %s22 = ssub.s32 128, 128
      %23 = vsyncadd [#allocation9], %s22
      %s24 = smul.addr %s20, 128
      %s25 = scalar_lea.hbm %s1, %s24
      %s27 = sshll.u32 [#allocation8], 4
      %s28 = int_to_ptr.vmem [resolvable:$true] %s27
      %30 = dma.hbm_to_vmem [thread:$0]  %s25, 128, %s28, [#allocation9]
    $region9: #{tpu_custom_call.1} parent=1 // pred_fallthru
      _
    // Predicated region
    $region10: #{tpu_custom_call.1} parent=1 // pred_check
      _
    $region11: #{tpu_custom_call.1} parent=1 // pred_check_branch
      %32 = sbr.rel (0) target = $region13
    $region12: #{tpu_custom_call.1} parent=1 // pred_region
      %s34 = ssub.s32 128, 128
      %35 = vsyncadd [#allocation12], %s34
      %s37 = sshll.u32 [#allocation11], 4
      %s38 = int_to_ptr.vmem [resolvable:$true] %s37
      %40 = dma.hbm_to_vmem [thread:$0]  %s2, 128, %s38, [#allocation12]
    $region13: #{tpu_custom_call.1} parent=1 // pred_fallthru
      _
    // Predicated region
    $region14: #{tpu_custom_call.1} parent=1 // pred_check
      _
    $region15: #{tpu_custom_call.1} parent=1 // pred_check_branch
      %42 = sbr.rel (0) target = $region17
    $region16: #{tpu_custom_call.1} parent=1 // pred_region
      %43 = dma.done [#allocation9], 128
    $region17: #{tpu_custom_call.1} parent=1 // pred_fallthru
      _
    // Predicated region
    $region18: #{tpu_custom_call.1} parent=1 // pred_check
      _
    $region19: #{tpu_custom_call.1} parent=1 // pred_check_branch
      %45 = sbr.rel (0) target = $region21
    $region20: #{tpu_custom_call.1} parent=1 // pred_region
      %46 = dma.done [#allocation12], 128
    $region21: #{tpu_custom_call.1} parent=1 // pred_fallthru
      _
    %s47 = sadd.s32 0, 0
    %s48 = sadd.s32 0, 0
    %s49 = sld [smem:[#allocation7]]
    %v50 = vstv %s49
    %v51 = vrcp.pop %v50
    %s52 = vtos %v51
    %p53 = scmp.eq.s32.totalorder 0, 0
    %p54 = scmp.eq.s32.totalorder 0, 0
    %p55 = pnand %p53, %p54
    %p56 = pneg %p55
    // Predicated region
    $region22: #{tpu_custom_call.1} parent=1 // pred_check
      _
    $region23: #{tpu_custom_call.1} parent=1 // pred_check_branch
      %58 = sbr.rel (%p55) target = $region25
    $region24: #{tpu_custom_call.1} parent=1 // pred_region
      %vm59 = vcmask 57344
      %60 = vst.msk [vmem:[#allocation14] sm:$0x1] %vm59, -inf
      %61 = vst.msk [vmem:[#allocation14 + $0x1] sm:$0x1] %vm59, 0.0
      %vm62 = vcmask 0
      %63 = vst.msk [vmem:[#allocation5] sm:$0x1] %vm62, 0.0
      %64 = vst.msk [vmem:[#allocation6] sm:$0x1] %vm62, 0.0
      %65 = vst [vmem:[#allocation16] sm:$0x1] 0.0
    $region25: #{tpu_custom_call.1} parent=1 // pred_fallthru
      _
    // Predicated region
    $region26: #{tpu_custom_call.1} parent=1 // pred_check
      %p66 = pneg %p54
    $region27: #{tpu_custom_call.1} parent=1 // pred_check_branch
      %68 = sbr.rel (%p66) target = $region29
    $region28: #{tpu_custom_call.1} parent=1 // pred_region
      %vm69 = vcmask 7168
      %70 = vst.msk [vmem:[#allocation3] sm:$0xff] %vm69, -inf
      %71 = vst.msk [vmem:[#allocation4] sm:$0xff] %vm69, 0.0
      %v72 = vld [vmem:[#allocation8] sm:$0xff]
      %v73 = vmul.f32 %v72, %v72
      %vm74 = vcmask 261120
      %v75 = vsel %vm74, %v73, 0.0
      %76 = vadd.xlane.f32.xlu0 %v75
      %v77 = vpop.xlane.xlu0 %76
      %v78 = vmax.f32 %v77, 1e-24
      %v79 = vrsqrt.pop %v78
      %v80 = vstv %s52
      %v81 = vmul.f32 %v80, %v79
      %v82 = vmul.f32 %v72, %v81
      %83 = vst.msk [vmem:[#allocation2] sm:$0xff] %vm74, %v82
    $region29: #{tpu_custom_call.1} parent=1 // pred_fallthru
      _
    %v84 = vld [vmem:[#allocation11] sm:$0xff]
    %v85 = vmul.f32 %v84, %v84
    %vm86 = vcmask 261120
    %v87 = vsel %vm86, %v85, 0.0
    %88 = vadd.xlane.f32.xlu0 %v87
    %v89 = vpop.xlane.xlu0 %88
    %v90 = vmax.f32 %v89, 1e-24
    %v91 = vrsqrt.pop %v90
    %v92 = vmul.f32 %v84, %v91
    %v93 = vld [vmem:[#allocation2] sm:$0xff]
    %v95 = vsel %vm86, %v93, 0
    %v98 = vsel %vm86, %v92, 0
    %100 = vmatprep.subr.mxu0 0.0
    %101 = vmatpush1.xpose.msra.mxu0 0.0
    %102 = vmatprep.subr.mxu0 0.0
    %103 = vmatpush1.xpose.msra.mxu0 0.0
    %104 = vmatprep.subr.mxu0 0.0
    %105 = vmatpush1.xpose.msra.mxu0 0.0
    %106 = vmatprep.subr.mxu0 0.0
    %107 = vmatpush1.xpose.msra.mxu0 0.0
    %108 = vmatprep.subr.mxu0 0.0
    %109 = vmatpush1.xpose.msra.mxu0 0.0
    %110 = vmatprep.subr.mxu0 0.0
    %111 = vmatpush1.xpose.msra.mxu0 0.0
    %112 = vmatprep.subr.mxu0 0.0
    %113 = vmatpush1.xpose.msra.mxu0 0.0
    %114 = vmatprep.subr.mxu0 0.0
    %115 = vmatpush1.xpose.msra.mxu0 0.0
    %116 = vmatprep.subr.mxu0 0.0
    %117 = vmatpush1.xpose.msra.mxu0 0.0
    %118 = vmatprep.subr.mxu0 0.0
    %119 = vmatpush1.xpose.msra.mxu0 0.0
    %120 = vmatprep.subr.mxu0 0.0
    %121 = vmatpush1.xpose.msra.mxu0 0.0
    %122 = vmatprep.subr.mxu0 0.0
    %123 = vmatpush1.xpose.msra.mxu0 0.0
    %124 = vmatprep.subr.mxu0 0.0
    %125 = vmatpush1.xpose.msra.mxu0 0.0
    %126 = vmatprep.subr.mxu0 0.0
    %127 = vmatpush1.xpose.msra.mxu0 0.0
    %128 = vmatprep.subr.mxu0 0.0
    %129 = vmatpush1.xpose.msra.mxu0 0.0
    %130 = vmatprep.subr.mxu0 0.0
    %131 = vmatpush1.xpose.msra.mxu0 %v98
    %132 = vmatprep.subr.mxu0 0.0
    %133 = vmatpush2.xpose.msra.mxu0 0.0
    %134 = vmatprep.subr.mxu0 0.0
    %135 = vmatpush2.xpose.msra.mxu0 0.0
    %136 = vmatprep.subr.mxu0 0.0
    %137 = vmatpush2.xpose.msra.mxu0 0.0
    %138 = vmatprep.subr.mxu0 0.0
    %139 = vmatpush2.xpose.msra.mxu0 0.0
    %140 = vmatprep.subr.mxu0 0.0
    %141 = vmatpush2.xpose.msra.mxu0 0.0
    %142 = vmatprep.subr.mxu0 0.0
    %143 = vmatpush2.xpose.msra.mxu0 0.0
    %144 = vmatprep.subr.mxu0 0.0
    %145 = vmatpush2.xpose.msra.mxu0 0.0
    %146 = vmatprep.subr.mxu0 0.0
    %147 = vmatpush2.xpose.msra.mxu0 0.0
    %148 = vmatprep.subr.mxu0 0.0
    %149 = vmatpush2.xpose.msra.mxu0 0.0
    %150 = vmatprep.subr.mxu0 0.0
    %151 = vmatpush2.xpose.msra.mxu0 0.0
    %152 = vmatprep.subr.mxu0 0.0
    %153 = vmatpush2.xpose.msra.mxu0 0.0
    %154 = vmatprep.subr.mxu0 0.0
    %155 = vmatpush2.xpose.msra.mxu0 0.0
    %156 = vmatprep.subr.mxu0 0.0
    %157 = vmatpush2.xpose.msra.mxu0 0.0
    %158 = vmatprep.subr.mxu0 0.0
    %159 = vmatpush2.xpose.msra.mxu0 0.0
    %160 = vmatprep.subr.mxu0 0.0
    %161 = vmatpush2.xpose.msra.mxu0 0.0
    %162 = vmatprep.subr.mxu0 0.0
    %163 = vmatpush2.xpose.msra.mxu0 0.0
    %164 = vmatprep.mubr.f32.mxu0 0.0
    %165 = vmatmul.mubr.f32.gmra.mxu0 %v95
    %v166 = vpop.f32.mrf.mxu0
    %v167 = vadd.f32 0.0, %v166
    %v168 = vpop.f32.mrf.mxu0
    %169 = vdwg.mxu0
    %vm170 = vcmask 64512
    %171 = vst.msk [vmem:[#allocation13] sm:$0xff] %vm170, %v167
    %v172 = vsel %vm170, %v167, -inf
    %173 = vmax.xlane.f32.xlu0 %v172
    %v174 = vpop.xlane.xlu0 %173
    %v175 = vld [vmem:[#allocation3] sm:$0xff]
    %v176 = vmax.f32 %v175, %v174
    %178 = vset.pattern.permute.xlu0 0
    %179 = vperm.xlu0 %178, %v176
    %v180 = vpop.permute.xlu0 %179
    %v182 = vsub.f32 %v167, %v180
    %v183 = vmul.f32 %v182, 1.442695
    %v184 = vpow.pop %v183
    %v185 = vld [vmem:[#allocation4] sm:$0xff]
    %v186 = vsub.f32 %v175, %v176
    %v187 = vmul.f32 %v186, 1.442695
    %v188 = vpow.pop %v187
    %v189 = vmul.f32 %v185, %v188
    %v190 = vsel %vm170, %v184, 0.0
    %191 = vadd.xlane.f32.xlu0 %v190
    %v192 = vpop.xlane.xlu0 %191
    %v193 = vadd.f32 %v189, %v192
    %vm194 = vcmask 7168
    %195 = vst.msk [vmem:[#allocation4] sm:$0xff] %vm194, %v193
    %196 = vst.msk [vmem:[#allocation3] sm:$0xff] %vm194, %v176
    %v197 = vsel %vm194, %v176, -inf
    %v198 = vrot.slane %v197, 4
    %v199 = vmax.f32 %v197, %v198
    %v200 = vrot.slane %v199, 2
    %v201 = vmax.f32 %v199, %v200
    %v202 = vrot.slane %v201, 1
    %v203 = vmax.f32 %v201, %v202
    %v204 = vsub.f32 %v176, %v203
    %v205 = vmul.f32 %v204, 1.442695
    %v206 = vpow.pop %v205
    %208 = vset.pattern.permute.xlu0 0
    %209 = vperm.xlu0 %208, %v206
    %v210 = vpop.permute.xlu0 %209
    %v212 = vmul.f32 %v184, %v210
    %v213 = vsel %vm170, %v212, 0.0
    %v214 = vrot.slane %v213, 4
    %v215 = vadd.f32 %v213, %v214
    %v216 = vrot.slane %v215, 2
    %v217 = vadd.f32 %v215, %v216
    %v218 = vrot.slane %v217, 1
    %v219 = vadd.f32 %v217, %v218
    %v220 = vld [vmem:[#allocation14] sm:$0x1]
    %v221 = vld [vmem:[#allocation14 + $0x1] sm:$0x1]
    %223 = vset.pattern.permute.xlu0 0
    %224 = vperm.xlu0 %223, %v203
    %v225 = vpop.permute.xlu0 %224
    %v227 = vmax.f32 %v220, %v225
    %v228 = vsub.f32 %v220, %v227
    %v229 = vmul.f32 %v228, 1.442695
    %v230 = vpow.pop %v229
    %v231 = vmul.f32 %v221, %v230
    %v232 = vsub.f32 %v225, %v227
    %v233 = vmul.f32 %v232, 1.442695
    %v234 = vpow.pop %v233
    %v235 = vmul.f32 %v219, %v234
    %v236 = vadd.f32 %v231, %v235
    %vm237 = vcmask 57344
    %238 = vst.msk [vmem:[#allocation14] sm:$0x1] %vm237, %v227
    %239 = vst.msk [vmem:[#allocation14 + $0x1] sm:$0x1] %vm237, %v236
    %s240 = sadd.s32 0, 0
    %p241 = scmp.eq.s32.totalorder 0, %s240
    // Predicated region
    $region30: #{tpu_custom_call.1} parent=1 // pred_check
      %p242 = pneg %p241
    $region31: #{tpu_custom_call.1} parent=1 // pred_check_branch
      %244 = sbr.rel (%p242) target = $region33
    $region32: #{tpu_custom_call.1} parent=1 // pred_region
      %v245 = vlaneseq
      %v246 = vshrl.u32 %v245, 7
      %v247 = vlaneseq
      %v248 = vand.u32 %v247, 127
      %vm249 = vcmp.eq.s32.totalorder %v246, %v248
      %v250 = vsel %vm249, %v167, 0.0
      %v251 = vld [vmem:[#allocation6] sm:$0x1]
      %v252 = vsel %vm170, %v250, 0.0
      %253 = vadd.xlane.f32.xlu0 %v252
      %v254 = vpop.xlane.xlu0 %253
      %v255 = vrot.slane %v254, 4
      %v256 = vadd.f32 %v254, %v255
      %v257 = vrot.slane %v256, 2
      %v258 = vadd.f32 %v256, %v257
      %v259 = vrot.slane %v258, 1
      %v260 = vadd.f32 %v258, %v259
      %v261 = vadd.f32 %v251, %v260
      %vm262 = vcmask 0
      %263 = vst.msk [vmem:[#allocation6] sm:$0x1] %vm262, %v261
    $region33: #{tpu_custom_call.1} parent=1 // pred_fallthru
      _
    // Predicated region
    $region34: #{tpu_custom_call.1} parent=1 // pred_check
      %p264 = pneg %p54
    $region35: #{tpu_custom_call.1} parent=1 // pred_check_branch
      %266 = sbr.rel (%p264) target = $region37
    $region36: #{tpu_custom_call.1} parent=1 // pred_region
      %v267 = vld [vmem:[#allocation4] sm:$0xff]
      %v268 = vlog2.pop %v267
      %v269 = vmul.f32 %v268, 0.6931472
      %v270 = vld [vmem:[#allocation3] sm:$0xff]
      %v271 = vadd.f32 %v269, %v270
      %v272 = vld [vmem:[#allocation5] sm:$0x1]
      %v273 = vsel %vm194, %v271, 0.0
      %v274 = vrot.slane %v273, 4
      %v275 = vadd.f32 %v273, %v274
      %v276 = vrot.slane %v275, 2
      %v277 = vadd.f32 %v275, %v276
      %v278 = vrot.slane %v277, 1
      %v279 = vadd.f32 %v277, %v278
      %v280 = vadd.f32 %v272, %v279
      %vm281 = vcmask 0
      %282 = vst.msk [vmem:[#allocation5] sm:$0x1] %vm281, %v280
    $region37: #{tpu_custom_call.1} parent=1 // pred_fallthru
      _
    // Predicated region
    $region38: #{tpu_custom_call.1} parent=1 // pred_check
      _
    $region39: #{tpu_custom_call.1} parent=1 // pred_check_branch
      %284 = sbr.rel (%p55) target = $region41
    $region40: #{tpu_custom_call.1} parent=1 // pred_region
      %v285 = vlaneseq
      %v286 = vand.u32 %v285, 127
      %vm287 = vcmp.eq.s32.totalorder %v286, 0
      %v288 = vld [vmem:[#allocation5] sm:$0x1]
      %290 = vset.pattern.permute.xlu0 0
      %291 = vperm.xlu0 %290, %v288
      %v292 = vpop.permute.xlu0 %291
      %v294 = vlaneseq
      %v295 = vshrl.u32 %v294, 7
      %v296 = vsub.s32 0, %v295
      %v297 = vrot.slane %v292, %v296
      %v298 = vsel %vm287, %v297, 0.0
      %vm299 = vcmp.eq.s32.totalorder %v286, 1
      %v300 = vld [vmem:[#allocation6] sm:$0x1]
      %302 = vset.pattern.permute.xlu0 0
      %303 = vperm.xlu0 %302, %v300
      %v304 = vpop.permute.xlu0 %303
      %v306 = vlaneseq
      %v307 = vshrl.u32 %v306, 7
      %v308 = vsub.s32 0, %v307
      %v309 = vrot.slane %v304, %v308
      %v310 = vsel %vm299, %v309, 0.0
      %v311 = vadd.f32 %v298, %v310
      %312 = vst [vmem:[#allocation16] sm:$0x1] %v311
    $region41: #{tpu_custom_call.1} parent=1 // pred_fallthru
      _
    // Predicated region
    $region42: #{tpu_custom_call.1} parent=1 // pred_check
      _
    $region43: #{tpu_custom_call.1} parent=1 // pred_check_branch
      %314 = sbr.rel (0) target = $region45
    $region44: #{tpu_custom_call.1} parent=1 // pred_region
      %s315 = sadd.s32 0, 0
      %s317 = ssub.s32 128, 128
      %318 = vsyncadd [#allocation10], %s317
      %s319 = smul.addr %s315, 128
      %s320 = scalar_lea.hbm %s3, %s319
      %s322 = sshll.u32 [#allocation13], 4
      %s323 = int_to_ptr.vmem [resolvable:$true] %s322
      %325 = dma.vmem_to_hbm [thread:$0]  %s323, 128, %s320, [#allocation10]
    $region45: #{tpu_custom_call.1} parent=1 // pred_fallthru
      _
    // Predicated region
    $region46: #{tpu_custom_call.1} parent=1 // pred_check
      _
    $region47: #{tpu_custom_call.1} parent=1 // pred_check_branch
      %327 = sbr.rel (0) target = $region49
    $region48: #{tpu_custom_call.1} parent=1 // pred_region
      %s329 = ssub.s32 32, 32
      %330 = vsyncadd [#allocation15], %s329
      %s332 = sshll.u32 [#allocation14], 4
      %s333 = int_to_ptr.vmem [resolvable:$true] %s332
      %335 = dma.vmem_to_hbm [thread:$0]  %s333, 32, %s4, [#allocation15]
    $region49: #{tpu_custom_call.1} parent=1 // pred_fallthru
      _
    // Predicated region
    $region50: #{tpu_custom_call.1} parent=1 // pred_check
      _
    $region51: #{tpu_custom_call.1} parent=1 // pred_check_branch
      %337 = sbr.rel (0) target = $region53
    $region52: #{tpu_custom_call.1} parent=1 // pred_region
      %s339 = ssub.s32 16, 16
      %340 = vsyncadd [#allocation15], %s339
      %s342 = sshll.u32 [#allocation16], 4
      %s343 = int_to_ptr.vmem [resolvable:$true] %s342
      %345 = dma.vmem_to_hbm [thread:$0]  %s343, 16, %s5, [#allocation15]
    $region53: #{tpu_custom_call.1} parent=1 // pred_fallthru
      _
    // Predicated region
    $region54: #{tpu_custom_call.1} parent=1 // pred_check
      _
    $region55: #{tpu_custom_call.1} parent=1 // pred_check_branch
      %347 = sbr.rel (0) target = $region57
    $region56: #{tpu_custom_call.1} parent=1 // pred_region
      %348 = dma.done [#allocation10], 128
    $region57: #{tpu_custom_call.1} parent=1 // pred_fallthru
      _
    // Predicated region
    $region58: #{tpu_custom_call.1} parent=1 // pred_check
      _
    $region59: #{tpu_custom_call.1} parent=1 // pred_check_branch
      %350 = sbr.rel (0) target = $region61
    $region60: #{tpu_custom_call.1} parent=1 // pred_region
      %351 = dma.done [#allocation15], 32
    $region61: #{tpu_custom_call.1} parent=1 // pred_fallthru
      _
    // Predicated region
    $region62: #{tpu_custom_call.1} parent=1 // pred_check
      _
    $region63: #{tpu_custom_call.1} parent=1 // pred_check_branch
      %353 = sbr.rel (0) target = $region65
    $region64: #{tpu_custom_call.1} parent=1 // pred_region
      %354 = dma.done [#allocation15], 16
    $region65: #{tpu_custom_call.1} parent=1 // pred_fallthru
      _
    %355 = vsyncpa [#allocation9], 1
    %356 = vsyncpa [#allocation12], 1
    %357 = vsyncpa [#allocation10], 1
    %358 = vsyncpa [#allocation15], 1

</llo_original>
